<compile_context>
chip_gen: v7x
topology: tpu7x:2x2x1
jax: 0.10.0
libtpu: 0.0.40
codegen_flags: <defaults>
</compile_context>

<pallas_src>
import functools

import jax
import jax.numpy as jnp
import numpy as np
from jax.experimental import pallas as pl
from jax.experimental.pallas import tpu as pltpu


# ----------------------------------------------------------------------------
# Synthetic style-layer structure (stands in for encode_features() output).
# (name, num_channels) — 'torgb' layers are excluded by exclude_rgb_layers.
# ----------------------------------------------------------------------------
STYLE_LAYERS = [
    ("conv_0", 64),
    ("torgb_0", 32),
    ("conv_1", 64),
    ("torgb_1", 32),
    ("conv_2", 64),
]
FULL_STYLE_DIM = sum(c for _, c in STYLE_LAYERS)  # 256


def kept_column_segments(total_channels):
    """Static (start, end) column windows kept by exclude_rgb_layers."""
    segments = []
    tensor_index = 0
    style_index = 0
    for name, num_channels in STYLE_LAYERS:
        if ("torgb" not in name) and (tensor_index < total_channels):
            segments.append((style_index, style_index + num_channels))
            tensor_index += num_channels
        style_index += num_channels
    return tuple(segments)


def exclude_rgb_layers(input_tensor, total_channels):
    """Plain-JAX gather — used ONLY for the setup-time dictionary side and the
    pure-JAX reference. The deltas-side gather is fused into the kernel."""
    segs = kept_column_segments(total_channels)
    return jnp.concatenate([input_tensor[:, s:e] for s, e in segs], axis=-1)


# ----------------------------------------------------------------------------
# Pallas kernel
# ----------------------------------------------------------------------------
def _tile_sse_partial(x):
    """[TB, C] f32 -> [8, 128] partial sum of x*x using only VPU vreg adds.

    TB % 8 == 0 and C % 128 == 0; the sublane split and the 128-aligned lane
    slices are tile-aligned, so no XLU cross-lane work per step. The final
    scalar reduce happens once in the wrapper.
    """
    tb, c = x.shape
    sq = x * x
    part = jnp.sum(sq.reshape(tb // 8, 8, c), axis=0)  # [8, C] — vreg adds
    acc = part[:, 0:128]
    for j in range(1, c // 128):
        acc = acc + part[:, j * 128:(j + 1) * 128]     # aligned lane-group adds
    return acc


def _style_clip_loss_kernel(deltas_ref, dict_ref, dict_t_ref, msd_ref, out_ref,
                            *, kept_segments):
    # Fused exclude_rgb_layers: static column gather done on the VMEM tile.
    deltas_full = deltas_ref[...]                                 # [TB, D_full]
    parts = [deltas_full[:, s:e] for s, e in kept_segments]
    deltas = parts[0] if len(parts) == 1 else jnp.concatenate(parts, axis=-1)
    # deltas: [TB, K] in the input dtype — fed straight to the MXU.

    dic = dict_ref[...]        # [K, N]  VMEM-resident dictionary
    dic_t = dict_t_ref[...]    # [N, K]  precomputed transpose (no XLU transpose)
    msd = msd_ref[...]         # [TB, N]

    # Reconstruction path: SSE of (deltas @ dict) vs msd.
    recon = jnp.dot(deltas, dic, preferred_element_type=jnp.float32)  # [TB, N]
    diff = recon - msd.astype(jnp.float32)
    out_ref[0, 0, :, :] = _tile_sse_partial(diff)

    # Alpha path: (msd @ dict.T), each row scaled by 1/max|alpha + 1e-6|.
    alpha = jnp.dot(msd, dic_t, preferred_element_type=jnp.float32)   # [TB, K]
    alpha_max = jnp.max(jnp.abs(alpha + 1e-6), axis=-1, keepdims=True)  # [TB,1]
    alpha_n = alpha * (jnp.float32(1.0) / alpha_max)   # exact recip on [TB,1]

    d32 = deltas.astype(jnp.float32)
    d_max = jnp.max(jnp.abs(d32), axis=-1, keepdims=True)               # [TB,1]
    # NOTE: matches the reference — an all-zero deltas row yields inf/NaN too.
    d_n = d32 * (jnp.float32(1.0) / d_max)

    out_ref[0, 1, :, :] = _tile_sse_partial(d_n - alpha_n)


def style_clip_loss(deltas, dict_adj, dict_adj_t, multi_style_dir, *,
                    block_b=None):
    """deltas: [B, D_full] (full style width, gather fused in-kernel);
    dict_adj: [K, N]; dict_adj_t: [N, K]; multi_style_dir: [B, N]."""
    B, D_full = deltas.shape
    K, N = dict_adj.shape
    assert dict_adj_t.shape == (N, K)
    assert multi_style_dir.shape == (B, N)
    assert (deltas.dtype == dict_adj.dtype == dict_adj_t.dtype
            == multi_style_dir.dtype)

    kept = kept_column_segments(K)
    assert sum(e - s for s, e in kept) == K, (kept, K)
    # TODO(synk): generalize the VPU partial-sum reduce to K/N not multiples of
    # 128 (pad the lane tail) and tile dict over N for huge StyleGAN widths on
    # v7x (64 MiB VMEM), keeping dict_t whole for the alpha row-max.
    assert K % 128 == 0 and N % 128 == 0 and D_full % 128 == 0

    itm = deltas.dtype.itemsize
    sub_mult = {4: 8, 2: 16, 1: 32}[itm]          # dtype-aware sublane packing
    if block_b is None:
        block_b = B if B <= 512 else 512
        while (B % block_b) or (block_b % sub_mult):
            block_b //= 2
    assert block_b >= sub_mult and block_b % sub_mult == 0 and B % block_b == 0
    grid_b = B // block_b

    # VMEM budget: streamed tiles double-buffered + resident dict copies.
    stream_bytes = 2 * 2 * block_b * (D_full + N) * itm
    resident_bytes = 2 * 2 * K * N * itm
    out_bytes = 2 * 2 * 8 * 128 * 4
    vmem_est = stream_bytes + resident_bytes + out_bytes + (4 << 20)
    try:
        phys_vmem = getattr(pltpu.get_tpu_info(), "vmem_capacity_bytes", None)
    except Exception:  # pragma: no cover - conservative fallback
        phys_vmem = None
    if not phys_vmem:
        phys_vmem = 128 * 1024 * 1024
    vmem_cap = (phys_vmem * 3) // 4               # ~48 MiB v7x, ~96 MiB v5e/v6e
    vmem_limit = int(min(max(2 * vmem_est, 8 << 20), vmem_cap))

    flops = 4 * B * K * N                         # two matmuls
    bytes_accessed = itm * (B * D_full + 2 * K * N + B * N) \
        + 4 * grid_b * 2 * 8 * 128

    kernel = functools.partial(_style_clip_loss_kernel, kept_segments=kept)

    # TODO(synk): if profiling shows exposed DMA at large B, add
    # pipeline_mode=pl.Buffered(3) to the two streamed BlockSpecs.
    partials = pl.pallas_call(
        kernel,
        out_shape=jax.ShapeDtypeStruct((grid_b, 2, 8, 128), jnp.float32),
        grid=(grid_b,),
        in_specs=[
            pl.BlockSpec((block_b, D_full), lambda i: (i, 0)),  # full deltas tile
            pl.BlockSpec((K, N), lambda i: (0, 0)),             # dict (resident)
            pl.BlockSpec((N, K), lambda i: (0, 0)),             # dict.T (resident)
            pl.BlockSpec((block_b, N), lambda i: (i, 0)),       # msd tile
        ],
        out_specs=pl.BlockSpec((1, 2, 8, 128), lambda i: (i, 0, 0, 0)),
        compiler_params=pltpu.CompilerParams(
            # Per-tile partial sums -> no carried accumulator -> B axis is
            # safely parallel (uses both TensorCores on v7x).
            dimension_semantics=("parallel",),
            vmem_limit_bytes=vmem_limit,
        ),
        cost_estimate=pl.CostEstimate(
            flops=flops, transcendentals=2 * B, bytes_accessed=bytes_accessed),
    )(deltas, dict_adj, dict_adj_t, multi_style_dir)

    sums = jnp.sum(partials, axis=(0, 2, 3))      # [2] f32
    recon_loss = sums[0] / jnp.float32(B * N)
    alpha_loss = sums[1] / jnp.float32(B * K)
    return recon_loss, alpha_loss


def style_clip_loss_ref(deltas, dict_adj, msd):
    """Pure-JAX reference (same math as the PyTorch forward)."""
    K = dict_adj.shape[0]
    deltas_adj = exclude_rgb_layers(deltas, K)
    recon = jnp.dot(deltas_adj, dict_adj, preferred_element_type=jnp.float32)
    recon_loss = jnp.mean((recon - msd.astype(jnp.float32)) ** 2)
    alpha = jnp.dot(msd, dict_adj.T, preferred_element_type=jnp.float32)
    alpha = alpha / jnp.max(jnp.abs(alpha + 1e-6), axis=-1, keepdims=True)
    d = deltas_adj.astype(jnp.float32)
    d_n = d / jnp.max(jnp.abs(d), axis=-1, keepdims=True)
    alpha_loss = jnp.mean((d_n - alpha) ** 2)
    return recon_loss, alpha_loss


if __name__ == "__main__":
    key = jax.random.PRNGKey(0)
    k1, k2, k3 = jax.random.split(key, 3)

    B = 64               # batch of delta vectors
    D = FULL_STYLE_DIM   # 256 full style-space width (incl. torgb columns)
    K = 128              # dictionary atoms (== kept style columns)

    deltas = jax.random.normal(k1, (B, D), jnp.float32)
    dictionary = jax.random.normal(k2, (K, D), jnp.float32)

    # Dictionary is a fixed model parameter: filter + transpose ONCE at setup.
    dict_adj = exclude_rgb_layers(dictionary, K)          # [128, 128]
    dict_adj_t = jnp.asarray(dict_adj).T                  # precomputed transpose
    N = dict_adj.shape[1]

    multi_style_dir = jax.random.normal(k3, (B, N), jnp.float32)  # [64, 128]

    # ------------------------------------------------------------------ f32 path
    recon_loss, alpha_loss = style_clip_loss(
        deltas, dict_adj, dict_adj_t, multi_style_dir)    # block_b = B = 64
    jax.block_until_ready((recon_loss, alpha_loss))

    recon_ref, alpha_ref = style_clip_loss_ref(deltas, dict_adj, multi_style_dir)
    np.testing.assert_allclose(np.asarray(recon_loss), np.asarray(recon_ref),
                               rtol=1e-3, atol=1e-4)
    np.testing.assert_allclose(np.asarray(alpha_loss), np.asarray(alpha_ref),
                               rtol=5e-3, atol=5e-4)

    # ------------------------------------------- bf16-fed MXU path (production)
    deltas_bf = deltas.astype(jnp.bfloat16)
    dict_bf = dict_adj.astype(jnp.bfloat16)
    dict_t_bf = jnp.asarray(dict_bf).T
    msd_bf = multi_style_dir.astype(jnp.bfloat16)

    recon_bf, alpha_bf = style_clip_loss(deltas_bf, dict_bf, dict_t_bf, msd_bf)
    jax.block_until_ready((recon_bf, alpha_bf))

    recon_bref, alpha_bref = style_clip_loss_ref(deltas_bf, dict_bf, msd_bf)
    np.testing.assert_allclose(np.asarray(recon_bf), np.asarray(recon_bref),
                               rtol=1e-2, atol=1e-3)
    np.testing.assert_allclose(np.asarray(alpha_bf), np.asarray(alpha_bref),
                               rtol=1e-2, atol=1e-3)

    print("KERNEL_OK")
</pallas_src>

<mosaic_0001>
module attributes {stable_mosaic.version = 11 : i64} {
  func.func @_style_clip_loss_kernel(%arg0: i32, %arg1: memref<64x256xf32, #tpu.memory_space<vmem>>, %arg2: memref<128x128xf32, #tpu.memory_space<vmem>>, %arg3: memref<128x128xf32, #tpu.memory_space<vmem>>, %arg4: memref<64x128xf32, #tpu.memory_space<vmem>>, %arg5: memref<1x2x8x128xf32, #tpu.memory_space<vmem>>) attributes {dimension_semantics = [#tpu.dimension_semantics<parallel>], iteration_bounds = array<i64: 1>, scalar_prefetch = 0 : i64, scratch_operands = 0 : i64, tpu.core_type = #tpu.core_type<tc>, window_params = [{transform_indices = @transform_0, window_bounds = array<i64: 64, 256>}, {pipeline_mode = #tpu.pipeline_mode<synchronous>, transform_indices = @transform_1, window_bounds = array<i64: 128, 128>}, {pipeline_mode = #tpu.pipeline_mode<synchronous>, transform_indices = @transform_2, window_bounds = array<i64: 128, 128>}, {transform_indices = @transform_3, window_bounds = array<i64: 64, 128>}, {transform_indices = @transform_4, window_bounds = array<i64: 1, 2, 8, 128>}]} {
    %c0 = arith.constant 0 : index
    %c0_0 = arith.constant 0 : index
    %0 = vector.load %arg1[%c0, %c0_0] : memref<64x256xf32, #tpu.memory_space<vmem>>, vector<64x256xf32>
    %1 = vector.extract_strided_slice %0 {offsets = [0, 0], sizes = [64, 64], strides = [1, 1]} : vector<64x256xf32> to vector<64x64xf32>
    %2 = vector.extract_strided_slice %0 {offsets = [0, 96], sizes = [64, 64], strides = [1, 1]} : vector<64x256xf32> to vector<64x64xf32>
    %3 = tpu.concatenate %1, %2 in 1 : vector<64x64xf32>, vector<64x64xf32> -> vector<64x128xf32>
    %c0_1 = arith.constant 0 : index
    %c0_2 = arith.constant 0 : index
    %4 = vector.load %arg2[%c0_1, %c0_2] : memref<128x128xf32, #tpu.memory_space<vmem>>, vector<128x128xf32>
    %c0_3 = arith.constant 0 : index
    %c0_4 = arith.constant 0 : index
    %5 = vector.load %arg3[%c0_3, %c0_4] : memref<128x128xf32, #tpu.memory_space<vmem>>, vector<128x128xf32>
    %c0_5 = arith.constant 0 : index
    %c0_6 = arith.constant 0 : index
    %6 = vector.load %arg4[%c0_5, %c0_6] : memref<64x128xf32, #tpu.memory_space<vmem>>, vector<64x128xf32>
    %cst = arith.constant dense<0.000000e+00> : vector<64x128xf32>
    %7 = tpu.matmul %3, %4, %cst {dimension_numbers = #tpu.dot_dimension_numbers<[1], [0], [0], [1], [0, 0, 1, 1], [], []>} : vector<64x128xf32>, vector<128x128xf32>, vector<64x128xf32> -> vector<64x128xf32>
    %8 = arith.subf %7, %6 : vector<64x128xf32>
    %9 = arith.mulf %8, %8 : vector<64x128xf32>
    %10 = vector.shape_cast %9 : vector<64x128xf32> to vector<8x8x128xf32>
    %cst_7 = arith.constant dense<0.000000e+00> : vector<8x128xf32>
    %11 = vector.multi_reduction <add>, %10, %cst_7 [0] : vector<8x8x128xf32> to vector<8x128xf32>
    %c0_8 = arith.constant 0 : index
    %c0_9 = arith.constant 0 : index
    %c0_10 = arith.constant 0 : index
    %c0_11 = arith.constant 0 : index
    %12 = vector.load %arg5[%c0_8, %c0_9, %c0_10, %c0_11] : memref<1x2x8x128xf32, #tpu.memory_space<vmem>>, vector<1x1x8x128xf32>
    %13 = vector.shape_cast %12 : vector<1x1x8x128xf32> to vector<8x128xf32>
    %14 = vector.shape_cast %11 : vector<8x128xf32> to vector<1x1x8x128xf32>
    tpu.vector_store %arg5[%c0_8, %c0_9, %c0_10, %c0_11], %14 {strides = array<i32>} : memref<1x2x8x128xf32, #tpu.memory_space<vmem>>, vector<1x1x8x128xf32>,
    %cst_12 = arith.constant dense<0.000000e+00> : vector<64x128xf32>
    %15 = tpu.matmul %6, %5, %cst_12 {dimension_numbers = #tpu.dot_dimension_numbers<[1], [0], [0], [1], [0, 0, 1, 1], [], []>} : vector<64x128xf32>, vector<128x128xf32>, vector<64x128xf32> -> vector<64x128xf32>
    %cst_13 = arith.constant 9.99999997E-7 : f32
    %16 = vector.broadcast %cst_13 : f32 to vector<64x128xf32>
    %17 = arith.addf %15, %16 : vector<64x128xf32>
    %18 = math.absf %17 : vector<64x128xf32>
    %cst_14 = arith.constant dense<0xFF800000> : vector<64xf32>
    %19 = vector.multi_reduction <maximumf>, %18, %cst_14 [1] : vector<64x128xf32> to vector<64xf32>
    %20 = vector.shape_cast %19 : vector<64xf32> to vector<64x1xf32>
    %cst_15 = arith.constant 1.000000e+00 : f32
    %21 = vector.broadcast %cst_15 : f32 to vector<64x1xf32>
    %22 = arith.divf %21, %20 : vector<64x1xf32>
    %23 = vector.broadcast %22 : vector<64x1xf32> to vector<64x128xf32>
    %24 = arith.mulf %15, %23 : vector<64x128xf32>
    %25 = math.absf %3 : vector<64x128xf32>
    %cst_16 = arith.constant dense<0xFF800000> : vector<64xf32>
    %26 = vector.multi_reduction <maximumf>, %25, %cst_16 [1] : vector<64x128xf32> to vector<64xf32>
    %27 = vector.shape_cast %26 : vector<64xf32> to vector<64x1xf32>
    %cst_17 = arith.constant 1.000000e+00 : f32
    %28 = vector.broadcast %cst_17 : f32 to vector<64x1xf32>
    %29 = arith.divf %28, %27 : vector<64x1xf32>
    %30 = vector.broadcast %29 : vector<64x1xf32> to vector<64x128xf32>
    %31 = arith.mulf %3, %30 : vector<64x128xf32>
    %32 = arith.subf %31, %24 : vector<64x128xf32>
    %33 = arith.mulf %32, %32 : vector<64x128xf32>
    %34 = vector.shape_cast %33 : vector<64x128xf32> to vector<8x8x128xf32>
    %cst_18 = arith.constant dense<0.000000e+00> : vector<8x128xf32>
    %35 = vector.multi_reduction <add>, %34, %cst_18 [0] : vector<8x8x128xf32> to vector<8x128xf32>
    %c0_19 = arith.constant 0 : index
    %c1 = arith.constant 1 : index
    %c0_20 = arith.constant 0 : index
    %c0_21 = arith.constant 0 : index
    %36 = vector.load %arg5[%c0_19, %c1, %c0_20, %c0_21] : memref<1x2x8x128xf32, #tpu.memory_space<vmem>>, vector<1x1x8x128xf32>
    %37 = vector.shape_cast %36 : vector<1x1x8x128xf32> to vector<8x128xf32>
    %38 = vector.shape_cast %35 : vector<8x128xf32> to vector<1x1x8x128xf32>
    tpu.vector_store %arg5[%c0_19, %c1, %c0_20, %c0_21], %38 {strides = array<i32>} : memref<1x2x8x128xf32, #tpu.memory_space<vmem>>, vector<1x1x8x128xf32>,
    return
  }
  func.func @transform_0(%arg0: i32) -> (i32, i32) {
    %c0_i32 = arith.constant 0 : i32
    %c0_i32_0 = arith.constant 0 : i32
    return %arg0, %c0_i32 : i32, i32
  }
  func.func @transform_1(%arg0: i32) -> (i32, i32) {
    %c0_i32 = arith.constant 0 : i32
    %c0_i32_0 = arith.constant 0 : i32
    %c0_i32_1 = arith.constant 0 : i32
    return %c0_i32, %c0_i32_0 : i32, i32
  }
  func.func @transform_2(%arg0: i32) -> (i32, i32) {
    %c0_i32 = arith.constant 0 : i32
    %c0_i32_0 = arith.constant 0 : i32
    %c0_i32_1 = arith.constant 0 : i32
    return %c0_i32, %c0_i32_0 : i32, i32
  }
  func.func @transform_3(%arg0: i32) -> (i32, i32) {
    %c0_i32 = arith.constant 0 : i32
    %c0_i32_0 = arith.constant 0 : i32
    return %arg0, %c0_i32 : i32, i32
  }
  func.func @transform_4(%arg0: i32) -> (i32, i32, i32, i32) {
    %c0_i32 = arith.constant 0 : i32
    %c0_i32_0 = arith.constant 0 : i32
    %c0_i32_1 = arith.constant 0 : i32
    %c0_i32_2 = arith.constant 0 : i32
    return %arg0, %c0_i32, %c0_i32_0, %c0_i32_1 : i32, i32, i32, i32
  }
}

</mosaic_0001>

<llo_original>
// kernel: tpu_custom_call.1
$region0: #{tpu_custom_call.1}
  #allocation0 [shape = 'u32[]', space=smem, size = 0x4, offset = 0x4, fixed_abs, tag = 'smem constant byte address 0x4 - core index']
  #allocation1 [shape = 'u32[144,128]{1,0:T(1,128)}', space=vmem, size = 0x12000, scoped, tag = 'internal scratch']
  %s0 = inlined_call_operand.hbm [shape: f32[64,256], index: 0, kind: input, shape index: {}]
  %s1 = inlined_call_operand.hbm [shape: f32[128,128], index: 1, kind: input, shape index: {}]
  %s2 = inlined_call_operand.hbm [shape: f32[128,128], index: 2, kind: input, shape index: {}]
  %s3 = inlined_call_operand.hbm [shape: f32[64,128], index: 3, kind: input, shape index: {}]
  %s4 = inlined_call_operand.hbm [shape: f32[1,2,8,128], index: 4, kind: output, shape index: {}]
  %s5 = sld [smem:[#allocation0]]
  $region42: #{tpu_custom_call.1} parent=0
    _
  %s7 = ssub.s32 1, %s5
  %s8 = scalar_select 0, %s7, %s5
  $region1: #{tpu_custom_call.1} parent=0
    #allocation2 [shape = 'u8[65536]{0}', space=vmem, size = 0x10000, scoped, tag = 'input window, operand 0, single buffered']
    #allocation3 [shape = 's32[1]{0}', space=sflag, size = 0x4, scoped, tag = 'scoped memory for tpu_custom_call.1']
    #allocation4 [shape = 's32[1]{0}', space=sflag, size = 0x4, scoped, tag = 'scoped memory for tpu_custom_call.1']
    #allocation5 [shape = 'u8[65536]{0}', space=vmem, size = 0x10000, scoped, tag = 'input window, operand 1, single buffered']
    #allocation6 [shape = 's32[1]{0}', space=sflag, size = 0x4, scoped, tag = 'scoped memory for tpu_custom_call.1']
    #allocation7 [shape = 'u8[65536]{0}', space=vmem, size = 0x10000, scoped, tag = 'input window, operand 2, single buffered']
    #allocation8 [shape = 'u8[32768]{0}', space=vmem, size = 0x8000, scoped, tag = 'input window, operand 3, single buffered']
    #allocation9 [shape = 's32[1]{0}', space=sflag, size = 0x4, scoped, tag = 'scoped memory for tpu_custom_call.1']
    #allocation10 [shape = 'u8[8192]{0}', space=vmem, size = 0x2000, scoped, tag = 'output window, operand 0, single buffered']
    %9 = vsyncpa [#allocation3], 0
    %10 = vsyncpa [#allocation6], 0
    %11 = vsyncpa [#allocation9], 0
    %12 = vsyncpa [#allocation4], 0
    // Predicated region
    $region2: #{tpu_custom_call.1} parent=1 // pred_check
      _
    $region3: #{tpu_custom_call.1} parent=1 // pred_check_branch
      %14 = sbr.rel (0) target = $region5
    $region4: #{tpu_custom_call.1} parent=1 // pred_region
      %s16 = ssub.s32 2048, 2048
      %17 = vsyncadd [#allocation3], %s16
      %s18 = sshll.u32 [#allocation2], 4
      %s19 = int_to_ptr.vmem [resolvable:$true] %s18
      %24 = dma.hbm_to_vmem [thread:$0]  %s0, 2048, %s19, [#allocation3], 256, 256, 16
    $region5: #{tpu_custom_call.1} parent=1 // pred_fallthru
      _
    // Predicated region
    $region6: #{tpu_custom_call.1} parent=1 // pred_check
      _
    $region7: #{tpu_custom_call.1} parent=1 // pred_check_branch
      %26 = sbr.rel (0) target = $region9
    $region8: #{tpu_custom_call.1} parent=1 // pred_region
      %s28 = ssub.s32 2048, 2048
      %29 = vsyncadd [#allocation6], %s28
      %s30 = sshll.u32 [#allocation5], 4
      %s31 = int_to_ptr.vmem [resolvable:$true] %s30
      %36 = dma.hbm_to_vmem [thread:$0]  %s1, 2048, %s31, [#allocation6], 128, 128, 8
    $region9: #{tpu_custom_call.1} parent=1 // pred_fallthru
      _
    // Predicated region
    $region10: #{tpu_custom_call.1} parent=1 // pred_check
      _
    $region11: #{tpu_custom_call.1} parent=1 // pred_check_branch
      %38 = sbr.rel (0) target = $region13
    $region12: #{tpu_custom_call.1} parent=1 // pred_region
      %s40 = ssub.s32 2048, 2048
      %41 = vsyncadd [#allocation6], %s40
      %s42 = sshll.u32 [#allocation7], 4
      %s43 = int_to_ptr.vmem [resolvable:$true] %s42
      %48 = dma.hbm_to_vmem [thread:$0]  %s2, 2048, %s43, [#allocation6], 128, 128, 8
    $region13: #{tpu_custom_call.1} parent=1 // pred_fallthru
      _
    // Predicated region
    $region14: #{tpu_custom_call.1} parent=1 // pred_check
      _
    $region15: #{tpu_custom_call.1} parent=1 // pred_check_branch
      %50 = sbr.rel (0) target = $region17
    $region16: #{tpu_custom_call.1} parent=1 // pred_region
      %s52 = ssub.s32 1024, 1024
      %53 = vsyncadd [#allocation9], %s52
      %s54 = sshll.u32 [#allocation8], 4
      %s55 = int_to_ptr.vmem [resolvable:$true] %s54
      %60 = dma.hbm_to_vmem [thread:$0]  %s3, 1024, %s55, [#allocation9], 128, 128, 8
    $region17: #{tpu_custom_call.1} parent=1 // pred_fallthru
      _
    // Predicated region
    $region18: #{tpu_custom_call.1} parent=1 // pred_check
      _
    $region19: #{tpu_custom_call.1} parent=1 // pred_check_branch
      %62 = sbr.rel (0) target = $region21
    $region20: #{tpu_custom_call.1} parent=1 // pred_region
      %63 = dma.done [#allocation3], 2048
    $region21: #{tpu_custom_call.1} parent=1 // pred_fallthru
      _
    // Predicated region
    $region22: #{tpu_custom_call.1} parent=1 // pred_check
      _
    $region23: #{tpu_custom_call.1} parent=1 // pred_check_branch
      %65 = sbr.rel (0) target = $region25
    $region24: #{tpu_custom_call.1} parent=1 // pred_region
      %66 = dma.done [#allocation6], 2048
    $region25: #{tpu_custom_call.1} parent=1 // pred_fallthru
      _
    // Predicated region
    $region26: #{tpu_custom_call.1} parent=1 // pred_check
      _
    $region27: #{tpu_custom_call.1} parent=1 // pred_check_branch
      %68 = sbr.rel (0) target = $region29
    $region28: #{tpu_custom_call.1} parent=1 // pred_region
      %69 = dma.done [#allocation6], 2048
    $region29: #{tpu_custom_call.1} parent=1 // pred_fallthru
      _
    // Predicated region
    $region30: #{tpu_custom_call.1} parent=1 // pred_check
      _
    $region31: #{tpu_custom_call.1} parent=1 // pred_check_branch
      %71 = sbr.rel (0) target = $region33
    $region32: #{tpu_custom_call.1} parent=1 // pred_region
      %72 = dma.done [#allocation9], 1024
    $region33: #{tpu_custom_call.1} parent=1 // pred_fallthru
      _
    %v73 = vld [vmem:[#allocation2] sm:$0xff]
    %v74 = vld [vmem:[#allocation2 + $0x8] sm:$0xff]
    %v75 = vld [vmem:[#allocation2 + $0x10] sm:$0xff]
    %v76 = vld [vmem:[#allocation2 + $0x18] sm:$0xff]
    %v77 = vld [vmem:[#allocation2 + $0x20] sm:$0xff]
    %v78 = vld [vmem:[#allocation2 + $0x28] sm:$0xff]
    %v79 = vld [vmem:[#allocation2 + $0x30] sm:$0xff]
    %v80 = vld [vmem:[#allocation2 + $0x38] sm:$0xff]
    %v81 = vld [vmem:[#allocation2 + $0x40] sm:$0xff]
    %v82 = vld [vmem:[#allocation2 + $0x48] sm:$0xff]
    %v83 = vld [vmem:[#allocation2 + $0x50] sm:$0xff]
    %v84 = vld [vmem:[#allocation2 + $0x58] sm:$0xff]
    %v85 = vld [vmem:[#allocation2 + $0x60] sm:$0xff]
    %v86 = vld [vmem:[#allocation2 + $0x68] sm:$0xff]
    %v87 = vld [vmem:[#allocation2 + $0x70] sm:$0xff]
    %v88 = vld [vmem:[#allocation2 + $0x78] sm:$0xff]
    %105 = vrot.lane.b32.xlu0 %v73, 96
    %v106 = vpop.permute.xlu0 %105
    %107 = vrot.lane.b32.xlu0 %v74, 96
    %v108 = vpop.permute.xlu0 %107
    %109 = vrot.lane.b32.xlu0 %v75, 96
    %v110 = vpop.permute.xlu0 %109
    %111 = vrot.lane.b32.xlu0 %v76, 96
    %v112 = vpop.permute.xlu0 %111
    %113 = vrot.lane.b32.xlu0 %v77, 96
    %v114 = vpop.permute.xlu0 %113
    %115 = vrot.lane.b32.xlu0 %v78, 96
    %v116 = vpop.permute.xlu0 %115
    %117 = vrot.lane.b32.xlu0 %v79, 96
    %v118 = vpop.permute.xlu0 %117
    %119 = vrot.lane.b32.xlu0 %v80, 96
    %v120 = vpop.permute.xlu0 %119
    %121 = vrot.lane.b32.xlu0 %v81, 96
    %v122 = vpop.permute.xlu0 %121
    %123 = vrot.lane.b32.xlu0 %v82, 96
    %v124 = vpop.permute.xlu0 %123
    %125 = vrot.lane.b32.xlu0 %v83, 96
    %v126 = vpop.permute.xlu0 %125
    %127 = vrot.lane.b32.xlu0 %v84, 96
    %v128 = vpop.permute.xlu0 %127
    %129 = vrot.lane.b32.xlu0 %v85, 96
    %v130 = vpop.permute.xlu0 %129
    %131 = vrot.lane.b32.xlu0 %v86, 96
    %v132 = vpop.permute.xlu0 %131
    %133 = vrot.lane.b32.xlu0 %v87, 96
    %v134 = vpop.permute.xlu0 %133
    %135 = vrot.lane.b32.xlu0 %v88, 96
    %v136 = vpop.permute.xlu0 %135
    %vm137 = vcmask 785408
    %v138 = vsel %vm137, %v106, %v108
    %v139 = vsel %vm137, %v110, %v112
    %v140 = vsel %vm137, %v114, %v116
    %v141 = vsel %vm137, %v118, %v120
    %v142 = vsel %vm137, %v122, %v124
    %v143 = vsel %vm137, %v126, %v128
    %v144 = vsel %vm137, %v130, %v132
    %v145 = vsel %vm137, %v134, %v136
    %vm154 = vcmask 523264
    %v155 = vsel %vm154, %v73, %v138
    %v156 = vsel %vm154, %v75, %v139
    %v157 = vsel %vm154, %v77, %v140
    %v158 = vsel %vm154, %v79, %v141
    %v159 = vsel %vm154, %v81, %v142
    %v160 = vsel %vm154, %v83, %v143
    %v161 = vsel %vm154, %v85, %v144
    %v162 = vsel %vm154, %v87, %v145
    %v163 = vld [vmem:[#allocation5] sm:$0xff]
    %v164 = vld [vmem:[#allocation5 + $0x8] sm:$0xff]
    %v165 = vld [vmem:[#allocation5 + $0x10] sm:$0xff]
    %v166 = vld [vmem:[#allocation5 + $0x18] sm:$0xff]
    %v167 = vld [vmem:[#allocation5 + $0x20] sm:$0xff]
    %v168 = vld [vmem:[#allocation5 + $0x28] sm:$0xff]
    %v169 = vld [vmem:[#allocation5 + $0x30] sm:$0xff]
    %v170 = vld [vmem:[#allocation5 + $0x38] sm:$0xff]
    %v171 = vld [vmem:[#allocation5 + $0x40] sm:$0xff]
    %v172 = vld [vmem:[#allocation5 + $0x48] sm:$0xff]
    %v173 = vld [vmem:[#allocation5 + $0x50] sm:$0xff]
    %v174 = vld [vmem:[#allocation5 + $0x58] sm:$0xff]
    %v175 = vld [vmem:[#allocation5 + $0x60] sm:$0xff]
    %v176 = vld [vmem:[#allocation5 + $0x68] sm:$0xff]
    %v177 = vld [vmem:[#allocation5 + $0x70] sm:$0xff]
    %v178 = vld [vmem:[#allocation5 + $0x78] sm:$0xff]
    %v179 = vld [vmem:[#allocation7] sm:$0xff]
    %v180 = vld [vmem:[#allocation7 + $0x8] sm:$0xff]
    %v181 = vld [vmem:[#allocation7 + $0x10] sm:$0xff]
    %v182 = vld [vmem:[#allocation7 + $0x18] sm:$0xff]
    %v183 = vld [vmem:[#allocation7 + $0x20] sm:$0xff]
    %v184 = vld [vmem:[#allocation7 + $0x28] sm:$0xff]
    %v185 = vld [vmem:[#allocation7 + $0x30] sm:$0xff]
    %v186 = vld [vmem:[#allocation7 + $0x38] sm:$0xff]
    %v187 = vld [vmem:[#allocation7 + $0x40] sm:$0xff]
    %v188 = vld [vmem:[#allocation7 + $0x48] sm:$0xff]
    %v189 = vld [vmem:[#allocation7 + $0x50] sm:$0xff]
    %v190 = vld [vmem:[#allocation7 + $0x58] sm:$0xff]
    %v191 = vld [vmem:[#allocation7 + $0x60] sm:$0xff]
    %v192 = vld [vmem:[#allocation7 + $0x68] sm:$0xff]
    %v193 = vld [vmem:[#allocation7 + $0x70] sm:$0xff]
    %v194 = vld [vmem:[#allocation7 + $0x78] sm:$0xff]
    %v195 = vld [vmem:[#allocation8] sm:$0xff]
    %v196 = vld [vmem:[#allocation8 + $0x8] sm:$0xff]
    %v197 = vld [vmem:[#allocation8 + $0x10] sm:$0xff]
    %v198 = vld [vmem:[#allocation8 + $0x18] sm:$0xff]
    %v199 = vld [vmem:[#allocation8 + $0x20] sm:$0xff]
    %v200 = vld [vmem:[#allocation8 + $0x28] sm:$0xff]
    %v201 = vld [vmem:[#allocation8 + $0x30] sm:$0xff]
    %v202 = vld [vmem:[#allocation8 + $0x38] sm:$0xff]
    %203 = vmatprep.subr.mxu0 0.0
    %204 = vmatpush1.msra.mxu0 %v163
    %205 = vmatprep.subr.mxu0 0.0
    %206 = vmatpush1.msra.mxu0 %v164
    %207 = vmatprep.subr.mxu0 0.0
    %208 = vmatpush1.msra.mxu0 %v165
    %209 = vmatprep.subr.mxu0 0.0
    %210 = vmatpush1.msra.mxu0 %v166
    %211 = vmatprep.subr.mxu0 0.0
    %212 = vmatpush1.msra.mxu0 %v167
    %213 = vmatprep.subr.mxu0 0.0
    %214 = vmatpush1.msra.mxu0 %v168
    %215 = vmatprep.subr.mxu0 0.0
    %216 = vmatpush1.msra.mxu0 %v169
    %217 = vmatprep.subr.mxu0 0.0
    %218 = vmatpush1.msra.mxu0 %v170
    %219 = vmatprep.subr.mxu0 0.0
    %220 = vmatpush1.msra.mxu0 %v171
    %221 = vmatprep.subr.mxu0 0.0
    %222 = vmatpush1.msra.mxu0 %v172
    %223 = vmatprep.subr.mxu0 0.0
    %224 = vmatpush1.msra.mxu0 %v173
    %225 = vmatprep.subr.mxu0 0.0
    %226 = vmatpush1.msra.mxu0 %v174
    %227 = vmatprep.subr.mxu0 0.0
    %228 = vmatpush1.msra.mxu0 %v175
    %229 = vmatprep.subr.mxu0 0.0
    %230 = vmatpush1.msra.mxu0 %v176
    %231 = vmatprep.subr.mxu0 0.0
    %232 = vmatpush1.msra.mxu0 %v177
    %233 = vmatprep.subr.mxu0 0.0
    %234 = vmatpush1.msra.mxu0 %v178
    %235 = vmatprep.subr.mxu0 0.0
    %236 = vmatpush1.msra.mxu0 0.0
    %237 = vmatprep.subr.mxu0 0.0
    %238 = vmatpush1.msra.mxu0 0.0
    %239 = vmatprep.subr.mxu0 0.0
    %240 = vmatpush1.msra.mxu0 0.0
    %241 = vmatprep.subr.mxu0 0.0
    %242 = vmatpush1.msra.mxu0 0.0
    %243 = vmatprep.subr.mxu0 0.0
    %244 = vmatpush1.msra.mxu0 0.0
    %245 = vmatprep.subr.mxu0 0.0
    %246 = vmatpush1.msra.mxu0 0.0
    %247 = vmatprep.subr.mxu0 0.0
    %248 = vmatpush1.msra.mxu0 0.0
    %249 = vmatprep.subr.mxu0 0.0
    %250 = vmatpush1.msra.mxu0 0.0
    %251 = vmatprep.subr.mxu0 0.0
    %252 = vmatpush1.msra.mxu0 0.0
    %253 = vmatprep.subr.mxu0 0.0
    %254 = vmatpush1.msra.mxu0 0.0
    %255 = vmatprep.subr.mxu0 0.0
    %256 = vmatpush1.msra.mxu0 0.0
    %257 = vmatprep.subr.mxu0 0.0
    %258 = vmatpush1.msra.mxu0 0.0
    %259 = vmatprep.subr.mxu0 0.0
    %260 = vmatpush1.msra.mxu0 0.0
    %261 = vmatprep.subr.mxu0 0.0
    %262 = vmatpush1.msra.mxu0 0.0
    %263 = vmatprep.subr.mxu0 0.0
    %264 = vmatpush1.msra.mxu0 0.0
    %265 = vmatprep.subr.mxu0 0.0
    %266 = vmatpush1.msra.mxu0 0.0
    %267 = vmatprep.mubr.f32.mxu0 0.0
    %268 = vmatmul.mubr.f32.gmra.mrb[0].mxu0 %v155
    %v269 = vpop.f32.mrb[0].mxu0
    %v270 = vadd.f32 0.0, %v269
    %v271 = vpop.f32.mrb[0].mxu0
    %272 = vmatprep.mubr.f32.mxu0 0.0
    %273 = vmatmul.mubr.f32.gmra.mrb[0].mxu0 %v156
    %v274 = vpop.f32.mrb[0].mxu0
    %v275 = vadd.f32 0.0, %v274
    %v276 = vpop.f32.mrb[0].mxu0
    %277 = vmatprep.mubr.f32.mxu0 0.0
    %278 = vmatmul.mubr.f32.gmra.mrb[0].mxu0 %v157
    %v279 = vpop.f32.mrb[0].mxu0
    %v280 = vadd.f32 0.0, %v279
    %v281 = vpop.f32.mrb[0].mxu0
    %282 = vmatprep.mubr.f32.mxu0 0.0
    %283 = vmatmul.mubr.f32.gmra.mrb[0].mxu0 %v158
    %v284 = vpop.f32.mrb[0].mxu0
    %v285 = vadd.f32 0.0, %v284
    %v286 = vpop.f32.mrb[0].mxu0
    %287 = vmatprep.mubr.f32.mxu0 0.0
    %288 = vmatmul.mubr.f32.gmra.mrb[0].mxu0 %v159
    %v289 = vpop.f32.mrb[0].mxu0
    %v290 = vadd.f32 0.0, %v289
    %v291 = vpop.f32.mrb[0].mxu0
    %292 = vmatprep.mubr.f32.mxu0 0.0
    %293 = vmatmul.mubr.f32.gmra.mrb[0].mxu0 %v160
    %v294 = vpop.f32.mrb[0].mxu0
    %v295 = vadd.f32 0.0, %v294
    %v296 = vpop.f32.mrb[0].mxu0
    %297 = vmatprep.mubr.f32.mxu0 0.0
    %298 = vmatmul.mubr.f32.gmra.mrb[0].mxu0 %v161
    %v299 = vpop.f32.mrb[0].mxu0
    %v300 = vadd.f32 0.0, %v299
    %v301 = vpop.f32.mrb[0].mxu0
    %302 = vmatprep.mubr.f32.mxu0 0.0
    %303 = vmatmul.mubr.f32.gmra.mrb[0].mxu0 %v162
    %v304 = vpop.f32.mrb[0].mxu0
    %v305 = vadd.f32 0.0, %v304
    %v306 = vpop.f32.mrb[0].mxu0
    %307 = vdwg.mxu0
    %v308 = vsub.f32 %v270, %v195
    %v309 = vsub.f32 %v275, %v196
    %v310 = vsub.f32 %v280, %v197
    %v311 = vsub.f32 %v285, %v198
    %v312 = vsub.f32 %v290, %v199
    %v313 = vsub.f32 %v295, %v200
    %v314 = vsub.f32 %v300, %v201
    %v315 = vsub.f32 %v305, %v202
    %v316 = vmul.f32 %v308, %v308
    %v317 = vmul.f32 %v309, %v309
    %v318 = vmul.f32 %v310, %v310
    %v319 = vmul.f32 %v311, %v311
    %v320 = vmul.f32 %v312, %v312
    %v321 = vmul.f32 %v313, %v313
    %v322 = vmul.f32 %v314, %v314
    %v323 = vmul.f32 %v315, %v315
    %v324 = vadd.f32 %v316, %v317
    %v325 = vadd.f32 %v324, %v318
    %v326 = vadd.f32 %v325, %v319
    %v327 = vadd.f32 %v326, %v320
    %v328 = vadd.f32 %v327, %v321
    %v329 = vadd.f32 %v328, %v322
    %v330 = vadd.f32 %v329, %v323
    %331 = vst [vmem:[#allocation10] sm:$0xff] %v330
    %332 = vmatprep.subr.mxu0 0.0
    %333 = vmatpush1.msra.mxu0 %v179
    %334 = vmatprep.subr.mxu0 0.0
    %335 = vmatpush1.msra.mxu0 %v180
    %336 = vmatprep.subr.mxu0 0.0
    %337 = vmatpush1.msra.mxu0 %v181
    %338 = vmatprep.subr.mxu0 0.0
    %339 = vmatpush1.msra.mxu0 %v182
    %340 = vmatprep.subr.mxu0 0.0
    %341 = vmatpush1.msra.mxu0 %v183
    %342 = vmatprep.subr.mxu0 0.0
    %343 = vmatpush1.msra.mxu0 %v184
    %344 = vmatprep.subr.mxu0 0.0
    %345 = vmatpush1.msra.mxu0 %v185
    %346 = vmatprep.subr.mxu0 0.0
    %347 = vmatpush1.msra.mxu0 %v186
    %348 = vmatprep.subr.mxu0 0.0
    %349 = vmatpush1.msra.mxu0 %v187
    %350 = vmatprep.subr.mxu0 0.0
    %351 = vmatpush1.msra.mxu0 %v188
    %352 = vmatprep.subr.mxu0 0.0
    %353 = vmatpush1.msra.mxu0 %v189
    %354 = vmatprep.subr.mxu0 0.0
    %355 = vmatpush1.msra.mxu0 %v190
    %356 = vmatprep.subr.mxu0 0.0
    %357 = vmatpush1.msra.mxu0 %v191
    %358 = vmatprep.subr.mxu0 0.0
    %359 = vmatpush1.msra.mxu0 %v192
    %360 = vmatprep.subr.mxu0 0.0
    %361 = vmatpush1.msra.mxu0 %v193
    %362 = vmatprep.subr.mxu0 0.0
    %363 = vmatpush1.msra.mxu0 %v194
    %364 = vmatprep.subr.mxu0 0.0
    %365 = vmatpush1.msra.mxu0 0.0
    %366 = vmatprep.subr.mxu0 0.0
    %367 = vmatpush1.msra.mxu0 0.0
    %368 = vmatprep.subr.mxu0 0.0
    %369 = vmatpush1.msra.mxu0 0.0
    %370 = vmatprep.subr.mxu0 0.0
    %371 = vmatpush1.msra.mxu0 0.0
    %372 = vmatprep.subr.mxu0 0.0
    %373 = vmatpush1.msra.mxu0 0.0
    %374 = vmatprep.subr.mxu0 0.0
    %375 = vmatpush1.msra.mxu0 0.0
    %376 = vmatprep.subr.mxu0 0.0
    %377 = vmatpush1.msra.mxu0 0.0
    %378 = vmatprep.subr.mxu0 0.0
    %379 = vmatpush1.msra.mxu0 0.0
    %380 = vmatprep.subr.mxu0 0.0
    %381 = vmatpush1.msra.mxu0 0.0
    %382 = vmatprep.subr.mxu0 0.0
    %383 = vmatpush1.msra.mxu0 0.0
    %384 = vmatprep.subr.mxu0 0.0
    %385 = vmatpush1.msra.mxu0 0.0
    %386 = vmatprep.subr.mxu0 0.0
    %387 = vmatpush1.msra.mxu0 0.0
    %388 = vmatprep.subr.mxu0 0.0
    %389 = vmatpush1.msra.mxu0 0.0
    %390 = vmatprep.subr.mxu0 0.0
    %391 = vmatpush1.msra.mxu0 0.0
    %392 = vmatprep.subr.mxu0 0.0
    %393 = vmatpush1.msra.mxu0 0.0
    %394 = vmatprep.subr.mxu0 0.0
    %395 = vmatpush1.msra.mxu0 0.0
    %396 = vmatprep.mubr.f32.mxu0 0.0
    %397 = vmatmul.mubr.f32.gmra.mrb[0].mxu0 %v195
    %v398 = vpop.f32.mrb[0].mxu0
    %v399 = vadd.f32 0.0, %v398
    %v400 = vpop.f32.mrb[0].mxu0
    %401 = vmatprep.mubr.f32.mxu0 0.0
    %402 = vmatmul.mubr.f32.gmra.mrb[0].mxu0 %v196
    %v403 = vpop.f32.mrb[0].mxu0
    %v404 = vadd.f32 0.0, %v403
    %v405 = vpop.f32.mrb[0].mxu0
    %406 = vmatprep.mubr.f32.mxu0 0.0
    %407 = vmatmul.mubr.f32.gmra.mrb[0].mxu0 %v197
    %v408 = vpop.f32.mrb[0].mxu0
    %v409 = vadd.f32 0.0, %v408
    %v410 = vpop.f32.mrb[0].mxu0
    %411 = vmatprep.mubr.f32.mxu0 0.0
    %412 = vmatmul.mubr.f32.gmra.mrb[0].mxu0 %v198
    %v413 = vpop.f32.mrb[0].mxu0
    %v414 = vadd.f32 0.0, %v413
    %v415 = vpop.f32.mrb[0].mxu0
    %416 = vmatprep.mubr.f32.mxu0 0.0
    %417 = vmatmul.mubr.f32.gmra.mrb[0].mxu0 %v199
    %v418 = vpop.f32.mrb[0].mxu0
    %v419 = vadd.f32 0.0, %v418
    %v420 = vpop.f32.mrb[0].mxu0
    %421 = vmatprep.mubr.f32.mxu0 0.0
    %422 = vmatmul.mubr.f32.gmra.mrb[0].mxu0 %v200
    %v423 = vpop.f32.mrb[0].mxu0
    %v424 = vadd.f32 0.0, %v423
    %v425 = vpop.f32.mrb[0].mxu0
    %426 = vmatprep.mubr.f32.mxu0 0.0
    %427 = vmatmul.mubr.f32.gmra.mrb[0].mxu0 %v201
    %v428 = vpop.f32.mrb[0].mxu0
    %v429 = vadd.f32 0.0, %v428
    %v430 = vpop.f32.mrb[0].mxu0
    %431 = vmatprep.mubr.f32.mxu0 0.0
    %432 = vmatmul.mubr.f32.gmra.mrb[0].mxu0 %v202
    %v433 = vpop.f32.mrb[0].mxu0
    %v434 = vadd.f32 0.0, %v433
    %v435 = vpop.f32.mrb[0].mxu0
    %436 = vdwg.mxu0
    %v437 = vadd.f32 %v399, 1e-06
    %v438 = vadd.f32 %v404, 1e-06
    %v439 = vadd.f32 %v409, 1e-06
    %v440 = vadd.f32 %v414, 1e-06
    %v441 = vadd.f32 %v419, 1e-06
    %v442 = vadd.f32 %v424, 1e-06
    %v443 = vadd.f32 %v429, 1e-06
    %v444 = vadd.f32 %v434, 1e-06
    %v445 = vand.u32 2147483647, %v437
    %v446 = vand.u32 2147483647, %v438
    %v447 = vand.u32 2147483647, %v439
    %v448 = vand.u32 2147483647, %v440
    %v449 = vand.u32 2147483647, %v441
    %v450 = vand.u32 2147483647, %v442
    %v451 = vand.u32 2147483647, %v443
    %v452 = vand.u32 2147483647, %v444
    %453 = vmax.xlane.f32.xlu0 %v445
    %v454 = vpop.xlane.xlu0 %453
    %455 = vmax.xlane.f32.xlu0 %v446
    %v456 = vpop.xlane.xlu0 %455
    %457 = vmax.xlane.f32.xlu0 %v447
    %v458 = vpop.xlane.xlu0 %457
    %459 = vmax.xlane.f32.xlu0 %v448
    %v460 = vpop.xlane.xlu0 %459
    %461 = vmax.xlane.f32.xlu0 %v449
    %v462 = vpop.xlane.xlu0 %461
    %463 = vmax.xlane.f32.xlu0 %v450
    %v464 = vpop.xlane.xlu0 %463
    %465 = vmax.xlane.f32.xlu0 %v451
    %v466 = vpop.xlane.xlu0 %465
    %467 = vmax.xlane.f32.xlu0 %v452
    %v468 = vpop.xlane.xlu0 %467
    %v469 = vrcp.pop %v454
    %v470 = vmul.f32 1.0, %v469
    %v471 = vrcp.pop %v456
    %v472 = vmul.f32 1.0, %v471
    %v473 = vrcp.pop %v458
    %v474 = vmul.f32 1.0, %v473
    %v475 = vrcp.pop %v460
    %v476 = vmul.f32 1.0, %v475
    %v477 = vrcp.pop %v462
    %v478 = vmul.f32 1.0, %v477
    %v479 = vrcp.pop %v464
    %v480 = vmul.f32 1.0, %v479
    %v481 = vrcp.pop %v466
    %v482 = vmul.f32 1.0, %v481
    %v483 = vrcp.pop %v468
    %v484 = vmul.f32 1.0, %v483
    %v485 = vmul.f32 %v399, %v470
    %v486 = vmul.f32 %v404, %v472
    %v487 = vmul.f32 %v409, %v474
    %v488 = vmul.f32 %v414, %v476
    %v489 = vmul.f32 %v419, %v478
    %v490 = vmul.f32 %v424, %v480
    %v491 = vmul.f32 %v429, %v482
    %v492 = vmul.f32 %v434, %v484
    %v493 = vand.u32 2147483647, %v155
    %v494 = vand.u32 2147483647, %v156
    %v495 = vand.u32 2147483647, %v157
    %v496 = vand.u32 2147483647, %v158
    %v497 = vand.u32 2147483647, %v159
    %v498 = vand.u32 2147483647, %v160
    %v499 = vand.u32 2147483647, %v161
    %v500 = vand.u32 2147483647, %v162
    %501 = vmax.xlane.f32.xlu0 %v493
    %v502 = vpop.xlane.xlu0 %501
    %503 = vmax.xlane.f32.xlu0 %v494
    %v504 = vpop.xlane.xlu0 %503
    %505 = vmax.xlane.f32.xlu0 %v495
    %v506 = vpop.xlane.xlu0 %505
    %507 = vmax.xlane.f32.xlu0 %v496
    %v508 = vpop.xlane.xlu0 %507
    %509 = vmax.xlane.f32.xlu0 %v497
    %v510 = vpop.xlane.xlu0 %509
    %511 = vmax.xlane.f32.xlu0 %v498
    %v512 = vpop.xlane.xlu0 %511
    %513 = vmax.xlane.f32.xlu0 %v499
    %v514 = vpop.xlane.xlu0 %513
    %515 = vmax.xlane.f32.xlu0 %v500
    %v516 = vpop.xlane.xlu0 %515
    %v517 = vrcp.pop %v502
    %v518 = vmul.f32 1.0, %v517
    %v519 = vrcp.pop %v504
    %v520 = vmul.f32 1.0, %v519
    %v521 = vrcp.pop %v506
    %v522 = vmul.f32 1.0, %v521
    %v523 = vrcp.pop %v508
    %v524 = vmul.f32 1.0, %v523
    %v525 = vrcp.pop %v510
    %v526 = vmul.f32 1.0, %v525
    %v527 = vrcp.pop %v512
    %v528 = vmul.f32 1.0, %v527
    %v529 = vrcp.pop %v514
    %v530 = vmul.f32 1.0, %v529
    %v531 = vrcp.pop %v516
    %v532 = vmul.f32 1.0, %v531
    %v533 = vmul.f32 %v155, %v518
    %v534 = vmul.f32 %v156, %v520
    %v535 = vmul.f32 %v157, %v522
    %v536 = vmul.f32 %v158, %v524
    %v537 = vmul.f32 %v159, %v526
    %v538 = vmul.f32 %v160, %v528
    %v539 = vmul.f32 %v161, %v530
    %v540 = vmul.f32 %v162, %v532
    %v541 = vsub.f32 %v533, %v485
    %v542 = vsub.f32 %v534, %v486
    %v543 = vsub.f32 %v535, %v487
    %v544 = vsub.f32 %v536, %v488
    %v545 = vsub.f32 %v537, %v489
    %v546 = vsub.f32 %v538, %v490
    %v547 = vsub.f32 %v539, %v491
    %v548 = vsub.f32 %v540, %v492
    %v549 = vmul.f32 %v541, %v541
    %v550 = vmul.f32 %v542, %v542
    %v551 = vmul.f32 %v543, %v543
    %v552 = vmul.f32 %v544, %v544
    %v553 = vmul.f32 %v545, %v545
    %v554 = vmul.f32 %v546, %v546
    %v555 = vmul.f32 %v547, %v547
    %v556 = vmul.f32 %v548, %v548
    %v557 = vadd.f32 %v549, %v550
    %v558 = vadd.f32 %v557, %v551
    %v559 = vadd.f32 %v558, %v552
    %v560 = vadd.f32 %v559, %v553
    %v561 = vadd.f32 %v560, %v554
    %v562 = vadd.f32 %v561, %v555
    %v563 = vadd.f32 %v562, %v556
    %s564 = scalar_lea.vmem [#allocation10], 8
    %565 = vst [vmem:[%s564] sm:$0xff] %v563
    // Predicated region
    $region34: #{tpu_custom_call.1} parent=1 // pred_check
      _
    $region35: #{tpu_custom_call.1} parent=1 // pred_check_branch
      %567 = sbr.rel (0) target = $region37
    $region36: #{tpu_custom_call.1} parent=1 // pred_region
      %s569 = ssub.s32 256, 256
      %570 = vsyncadd [#allocation4], %s569
      %s571 = sshll.u32 [#allocation10], 4
      %s572 = int_to_ptr.vmem [resolvable:$true] %s571
      %577 = dma.vmem_to_hbm [thread:$0]  %s572, 256, %s4, [#allocation4], 128, 128, 8
    $region37: #{tpu_custom_call.1} parent=1 // pred_fallthru
      _
    // Predicated region
    $region38: #{tpu_custom_call.1} parent=1 // pred_check
      _
    $region39: #{tpu_custom_call.1} parent=1 // pred_check_branch
      %579 = sbr.rel (0) target = $region41
    $region40: #{tpu_custom_call.1} parent=1 // pred_region
      %580 = dma.done [#allocation4], 256
    $region41: #{tpu_custom_call.1} parent=1 // pred_fallthru
      _
    %581 = vsyncpa [#allocation3], 1
    %582 = vsyncpa [#allocation6], 1
    %583 = vsyncpa [#allocation9], 1
    %584 = vsyncpa [#allocation4], 1

</llo_original>
